<compile_context>
chip_gen: v6e
topology: v6e:2x2x1
jax: 0.10.0
libtpu: 0.0.40
codegen_flags: <defaults>
</compile_context>

<pallas_src>
import jax
import jax.numpy as jnp
from jax.experimental import pallas as pl
from jax.experimental.pallas import tpu as pltpu


def new_end_model_kernel(x1_ref, x2_ref, w1_ref, b1_ref, w2a_ref, w2b_ref,
                         b2_ref, o_ref):
    # x1_ref: (TB, 200)   x2_ref: (TB, 5)
    # w1_ref: (200, 20)   b1_ref: (1, 20) f32
    # w2a_ref: (20, OUT)  w2b_ref: (5, OUT)  b2_ref: (1, OUT) f32
    # o_ref:  (TB, OUT)
    h = jnp.dot(x1_ref[...], w1_ref[...], preferred_element_type=jnp.float32)
    h = h + b1_ref[...]                 # bias-add in f32
    h = jnp.maximum(h, 0.0)             # Dropout(0.1) == identity at inference

    # Second Linear(25, OUT) with the concat folded into two matmuls.
    # h stays f32 (no down-cast); accumulation f32 via preferred_element_type.
    y = jnp.dot(h, w2a_ref[...], preferred_element_type=jnp.float32)
    y = y + jnp.dot(x2_ref[...], w2b_ref[...],
                    preferred_element_type=jnp.float32)
    y = y + b2_ref[...]
    o_ref[...] = y.astype(o_ref.dtype)


def _round_down8(n):
    return max(8, (n // 8) * 8)


def new_end_model_forward(x1, x2, w1, b1, w2, b2, *, block_b=4096,
                          weight_dtype=None, out_dtype=None,
                          x1_buffer_count=None):
    """Forward pass of NewEndModel (inference semantics).

    x1: (B, 200)   x2: (B, 5)
    w1: (200, 20)  b1: (20,)     -- first Linear, weight already (in, out)
    w2: (25, OUT)  b2: (OUT,)    -- second Linear, weight already (in, out)

    For the low-precision path, pass bf16 x1/x2 from the caller (the wrapper
    deliberately does NOT cast the streamed inputs -- that would add a full
    extra HBM pass). Weights (tiny) are cast to x1.dtype (or weight_dtype).
    """
    B, d1 = x1.shape
    d2 = x2.shape[1]
    h_dim = w1.shape[1]                  # 20
    out_dim = w2.shape[1]
    assert w2.shape[0] == h_dim + d2, "w2 in_features must equal 20 + x2_dim"

    out_dtype = x1.dtype if out_dtype is None else out_dtype

    w_dtype = x1.dtype if weight_dtype is None else weight_dtype
    w1 = w1.astype(w_dtype)
    w2 = w2.astype(w_dtype)
    b1_2d = b1.astype(jnp.float32).reshape(1, h_dim)
    b2_2d = b2.astype(jnp.float32).reshape(1, out_dim)
    w2a = w2[:h_dim]                     # (20, OUT)
    w2b = w2[h_dim:]                     # (5, OUT)

    # ---- batch-tile selection ------------------------------------------
    def lane_pad(c):
        return pl.cdiv(c, 128) * 128

    # Per-row VMEM bytes: double-buffered streamed I/O + f32 intermediates.
    bytes_per_row = (
        2 * lane_pad(d1) * x1.dtype.itemsize
        + 2 * lane_pad(d2) * x2.dtype.itemsize
        + 2 * lane_pad(out_dim) * jnp.dtype(out_dtype).itemsize
        + lane_pad(h_dim) * 4 + lane_pad(out_dim) * 4)
    vmem_budget = 24 * 1024 * 1024       # headroom under the 32 MiB scoped limit
    tb_budget = _round_down8(vmem_budget // bytes_per_row)

    tb = min(block_b, B, tb_budget)
    # Keep >=2 grid steps for large B so both v7x TensorCores get work.
    if B >= 1024:
        tb = min(tb, _round_down8(pl.cdiv(B, 2)))
    if tb != B:
        tb = _round_down8(tb)            # (8,128) sublane rule unless full-dim
    grid_b = pl.cdiv(B, tb)
    # Ragged tails (B % tb != 0): no jnp.pad / output slice. Pallas partial-block
    # handling reads garbage into the OOB rows (row-independent compute) and
    # masks them on write-back.

    flops = 2 * B * (d1 * h_dim + (h_dim + d2) * out_dim)
    nbytes = lambda a: a.size * a.dtype.itemsize
    cost = pl.CostEstimate(
        flops=flops,
        transcendentals=0,
        bytes_accessed=(nbytes(x1) + nbytes(x2) + nbytes(w1) + nbytes(w2a)
                        + nbytes(w2b) + nbytes(b1_2d) + nbytes(b2_2d)
                        + B * out_dim * jnp.dtype(out_dtype).itemsize))

    def batch_spec(cols, pipeline_mode=None):
        if pipeline_mode is None:
            return pl.BlockSpec((tb, cols), lambda i: (i, 0))
        return pl.BlockSpec((tb, cols), lambda i: (i, 0),
                            pipeline_mode=pipeline_mode)

    resident = lambda shape: pl.BlockSpec(shape, lambda i: (0, 0))

    # Optional v7x sweep knob: extra x1 buffer depth (off by default).
    x1_mode = pl.Buffered(x1_buffer_count) if x1_buffer_count else None

    y = pl.pallas_call(
        new_end_model_kernel,
        out_shape=jax.ShapeDtypeStruct((B, out_dim), out_dtype),
        grid=(grid_b,),
        in_specs=[
            batch_spec(d1, x1_mode),     # x1  (TB, 200), streamed per tile
            batch_spec(d2),              # x2  (TB, 5),   streamed per tile
            resident(w1.shape),          # weights/biases: DMA'd once, resident
            resident(b1_2d.shape),
            resident(w2a.shape),
            resident(w2b.shape),
            resident(b2_2d.shape),
        ],
        out_specs=batch_spec(out_dim),
        compiler_params=pltpu.CompilerParams(
            dimension_semantics=("parallel",),
            vmem_limit_bytes=32 * 1024 * 1024),
        cost_estimate=cost,
    )(x1, x2, w1, b1_2d, w2a, w2b, b2_2d)

    return y


def reference(x1, x2, w1, b1, w2, b2):
    h = jnp.maximum(x1 @ w1 + b1, 0.0)           # dropout == identity (eval)
    return jnp.concatenate([h, x2], axis=1) @ w2 + b2


def init_params(key, output_dim, x2_dim=5):
    """Deterministic init matching NewEndModel's nn.Linear shapes.

    PyTorch stores Linear weight as (out, in); we build (in, out) directly
    (already transposed) for the kernel's x @ W layout.
    """
    k1, k2, k3, k4 = jax.random.split(key, 4)
    bound1 = 1.0 / (200.0 ** 0.5)
    w1 = jax.random.uniform(k1, (200, 20), jnp.float32, -bound1, bound1)
    b1 = jax.random.uniform(k2, (20,), jnp.float32, -bound1, bound1)
    in2 = 20 + x2_dim                            # 25
    bound2 = 1.0 / (float(in2) ** 0.5)
    w2 = jax.random.uniform(k3, (in2, output_dim), jnp.float32, -bound2, bound2)
    b2 = jax.random.uniform(k4, (output_dim,), jnp.float32, -bound2, bound2)
    return w1, b1, w2, b2


if __name__ == "__main__":
    key = jax.random.PRNGKey(0)
    kx1, kx2, kp = jax.random.split(key, 3)

    B = 200          # small batch
    X2_DIM = 5       # concat(20, 5) == 25 == out_layer in_features
    OUTPUT = 16      # `output` arg of NewEndModel

    x1 = jax.random.normal(kx1, (B, 200), jnp.float32)
    x2 = jax.random.normal(kx2, (B, X2_DIM), jnp.float32)
    w1, b1, w2, b2 = init_params(kp, OUTPUT, x2_dim=X2_DIM)

    ref = reference(x1, x2, w1, b1, w2, b2)

    # 1) f32, default tile (single block covering the small batch).
    y = jax.block_until_ready(new_end_model_forward(x1, x2, w1, b1, w2, b2))
    assert y.shape == (B, OUTPUT)
    assert jnp.allclose(y, ref, atol=1e-5, rtol=1e-5)

    # 2) f32, multi-tile batch grid with a ragged last block (200 -> 3x64 + 8),
    #    exercising Pallas partial-block masking (no jnp.pad / slice).
    y_tiled = jax.block_until_ready(
        new_end_model_forward(x1, x2, w1, b1, w2, b2, block_b=64))
    assert y_tiled.shape == (B, OUTPUT)
    assert jnp.allclose(y_tiled, ref, atol=1e-5, rtol=1e-5)

    # 3) bf16 inputs supplied by the caller (true halved-HBM-read path);
    #    weights auto-cast in the wrapper, accumulation stays f32.
    y_bf16 = jax.block_until_ready(
        new_end_model_forward(x1.astype(jnp.bfloat16), x2.astype(jnp.bfloat16),
                              w1, b1, w2, b2, block_b=64))
    assert y_bf16.shape == (B, OUTPUT)
    assert jnp.allclose(y_bf16.astype(jnp.float32), ref, atol=5e-2, rtol=5e-2)

    # 4) Larger batch: exercises the >=2-grid-step cap (v7x megacore path)
    #    and the larger default tile with a ragged tail.
    B_L = 3000
    kx3, kx4 = jax.random.split(jax.random.PRNGKey(1), 2)
    x1L = jax.random.normal(kx3, (B_L, 200), jnp.float32)
    x2L = jax.random.normal(kx4, (B_L, X2_DIM), jnp.float32)
    refL = reference(x1L, x2L, w1, b1, w2, b2)
    yL = jax.block_until_ready(new_end_model_forward(x1L, x2L, w1, b1, w2, b2))
    assert yL.shape == (B_L, OUTPUT)
    assert jnp.allclose(yL, refL, atol=1e-5, rtol=1e-5)

    print("KERNEL_OK")
</pallas_src>

<mosaic_0001>
module attributes {stable_mosaic.version = 11 : i64} {
  func.func @new_end_model_kernel(%arg0: i32, %arg1: memref<200x200xf32, #tpu.memory_space<vmem>>, %arg2: memref<200x5xf32, #tpu.memory_space<vmem>>, %arg3: memref<200x20xf32, #tpu.memory_space<vmem>>, %arg4: memref<1x20xf32, #tpu.memory_space<vmem>>, %arg5: memref<20x16xf32, #tpu.memory_space<vmem>>, %arg6: memref<5x16xf32, #tpu.memory_space<vmem>>, %arg7: memref<1x16xf32, #tpu.memory_space<vmem>>, %arg8: memref<200x16xf32, #tpu.memory_space<vmem>>) attributes {dimension_semantics = [#tpu.dimension_semantics<parallel>], iteration_bounds = array<i64: 1>, scalar_prefetch = 0 : i64, scratch_operands = 0 : i64, tpu.core_type = #tpu.core_type<tc>, window_params = [{transform_indices = @transform_0, window_bounds = array<i64: 200, 200>}, {transform_indices = @transform_1, window_bounds = array<i64: 200, 5>}, {pipeline_mode = #tpu.pipeline_mode<synchronous>, transform_indices = @transform_2, window_bounds = array<i64: 200, 20>}, {pipeline_mode = #tpu.pipeline_mode<synchronous>, transform_indices = @transform_3, window_bounds = array<i64: 1, 20>}, {pipeline_mode = #tpu.pipeline_mode<synchronous>, transform_indices = @transform_4, window_bounds = array<i64: 20, 16>}, {pipeline_mode = #tpu.pipeline_mode<synchronous>, transform_indices = @transform_5, window_bounds = array<i64: 5, 16>}, {pipeline_mode = #tpu.pipeline_mode<synchronous>, transform_indices = @transform_6, window_bounds = array<i64: 1, 16>}, {transform_indices = @transform_7, window_bounds = array<i64: 200, 16>}]} {
    %c0 = arith.constant 0 : index
    %c0_0 = arith.constant 0 : index
    %0 = vector.load %arg1[%c0, %c0_0] : memref<200x200xf32, #tpu.memory_space<vmem>>, vector<200x200xf32>
    %c0_1 = arith.constant 0 : index
    %c0_2 = arith.constant 0 : index
    %1 = vector.load %arg3[%c0_1, %c0_2] : memref<200x20xf32, #tpu.memory_space<vmem>>, vector<200x20xf32>
    %cst = arith.constant dense<0.000000e+00> : vector<200x20xf32>
    %2 = tpu.matmul %0, %1, %cst {dimension_numbers = #tpu.dot_dimension_numbers<[1], [0], [0], [1], [0, 0, 1, 1], [], []>} : vector<200x200xf32>, vector<200x20xf32>, vector<200x20xf32> -> vector<200x20xf32>
    %c0_3 = arith.constant 0 : index
    %c0_4 = arith.constant 0 : index
    %3 = vector.load %arg4[%c0_3, %c0_4] : memref<1x20xf32, #tpu.memory_space<vmem>>, vector<1x20xf32>
    %4 = vector.broadcast %3 : vector<1x20xf32> to vector<200x20xf32>
    %5 = arith.addf %2, %4 : vector<200x20xf32>
    %cst_5 = arith.constant 0.000000e+00 : f32
    %6 = vector.broadcast %cst_5 : f32 to vector<200x20xf32>
    %7 = arith.maximumf %5, %6 : vector<200x20xf32>
    %c0_6 = arith.constant 0 : index
    %c0_7 = arith.constant 0 : index
    %8 = vector.load %arg5[%c0_6, %c0_7] : memref<20x16xf32, #tpu.memory_space<vmem>>, vector<20x16xf32>
    %cst_8 = arith.constant dense<0.000000e+00> : vector<200x16xf32>
    %9 = tpu.matmul %7, %8, %cst_8 {dimension_numbers = #tpu.dot_dimension_numbers<[1], [0], [0], [1], [0, 0, 1, 1], [], []>} : vector<200x20xf32>, vector<20x16xf32>, vector<200x16xf32> -> vector<200x16xf32>
    %c0_9 = arith.constant 0 : index
    %c0_10 = arith.constant 0 : index
    %10 = vector.load %arg2[%c0_9, %c0_10] : memref<200x5xf32, #tpu.memory_space<vmem>>, vector<200x5xf32>
    %c0_11 = arith.constant 0 : index
    %c0_12 = arith.constant 0 : index
    %11 = vector.load %arg6[%c0_11, %c0_12] : memref<5x16xf32, #tpu.memory_space<vmem>>, vector<5x16xf32>
    %cst_13 = arith.constant dense<0.000000e+00> : vector<200x16xf32>
    %12 = tpu.matmul %10, %11, %cst_13 {dimension_numbers = #tpu.dot_dimension_numbers<[1], [0], [0], [1], [0, 0, 1, 1], [], []>} : vector<200x5xf32>, vector<5x16xf32>, vector<200x16xf32> -> vector<200x16xf32>
    %13 = arith.addf %9, %12 : vector<200x16xf32>
    %c0_14 = arith.constant 0 : index
    %c0_15 = arith.constant 0 : index
    %14 = vector.load %arg7[%c0_14, %c0_15] : memref<1x16xf32, #tpu.memory_space<vmem>>, vector<1x16xf32>
    %15 = vector.broadcast %14 : vector<1x16xf32> to vector<200x16xf32>
    %16 = arith.addf %13, %15 : vector<200x16xf32>
    %c0_16 = arith.constant 0 : index
    %c0_17 = arith.constant 0 : index
    %17 = vector.load %arg8[%c0_16, %c0_17] : memref<200x16xf32, #tpu.memory_space<vmem>>, vector<200x16xf32>
    tpu.vector_store %arg8[%c0_16, %c0_17], %16 {strides = array<i32>} : memref<200x16xf32, #tpu.memory_space<vmem>>, vector<200x16xf32>,
    return
  }
  func.func @transform_0(%arg0: i32) -> (i32, i32) {
    %c0_i32 = arith.constant 0 : i32
    %c0_i32_0 = arith.constant 0 : i32
    return %arg0, %c0_i32 : i32, i32
  }
  func.func @transform_1(%arg0: i32) -> (i32, i32) {
    %c0_i32 = arith.constant 0 : i32
    %c0_i32_0 = arith.constant 0 : i32
    return %arg0, %c0_i32 : i32, i32
  }
  func.func @transform_2(%arg0: i32) -> (i32, i32) {
    %c0_i32 = arith.constant 0 : i32
    %c0_i32_0 = arith.constant 0 : i32
    %c0_i32_1 = arith.constant 0 : i32
    return %c0_i32, %c0_i32_0 : i32, i32
  }
  func.func @transform_3(%arg0: i32) -> (i32, i32) {
    %c0_i32 = arith.constant 0 : i32
    %c0_i32_0 = arith.constant 0 : i32
    %c0_i32_1 = arith.constant 0 : i32
    return %c0_i32, %c0_i32_0 : i32, i32
  }
  func.func @transform_4(%arg0: i32) -> (i32, i32) {
    %c0_i32 = arith.constant 0 : i32
    %c0_i32_0 = arith.constant 0 : i32
    %c0_i32_1 = arith.constant 0 : i32
    return %c0_i32, %c0_i32_0 : i32, i32
  }
  func.func @transform_5(%arg0: i32) -> (i32, i32) {
    %c0_i32 = arith.constant 0 : i32
    %c0_i32_0 = arith.constant 0 : i32
    %c0_i32_1 = arith.constant 0 : i32
    return %c0_i32, %c0_i32_0 : i32, i32
  }
  func.func @transform_6(%arg0: i32) -> (i32, i32) {
    %c0_i32 = arith.constant 0 : i32
    %c0_i32_0 = arith.constant 0 : i32
    %c0_i32_1 = arith.constant 0 : i32
    return %c0_i32, %c0_i32_0 : i32, i32
  }
  func.func @transform_7(%arg0: i32) -> (i32, i32) {
    %c0_i32 = arith.constant 0 : i32
    %c0_i32_0 = arith.constant 0 : i32
    return %arg0, %c0_i32 : i32, i32
  }
}

</mosaic_0001>

<llo_original>
// kernel: tpu_custom_call.1
$region0: #{tpu_custom_call.1}
  #allocation0 [shape = 'u32[]', space=smem, size = 0x4, offset = 0x4, fixed_abs, tag = 'smem constant byte address 0x4 - core index']
  #allocation1 [shape = 'u32[144,128]{1,0:T(1,128)}', space=vmem, size = 0x12000, scoped, tag = 'internal scratch']
  %s0 = inlined_call_operand.vmem [shape: f32[200,200], index: 0, kind: input, shape index: {}]
  %s1 = inlined_call_operand.vmem [shape: f32[200,5], index: 1, kind: input, shape index: {}]
  %s2 = inlined_call_operand.vmem [shape: f32[200,20], index: 2, kind: input, shape index: {}]
  %s3 = inlined_call_operand.vmem [shape: f32[1,20], index: 3, kind: input, shape index: {}]
  %s4 = inlined_call_operand.vmem [shape: f32[20,16], index: 4, kind: input, shape index: {}]
  %s5 = inlined_call_operand.vmem [shape: f32[5,16], index: 5, kind: input, shape index: {}]
  %s6 = inlined_call_operand.vmem [shape: f32[1,16], index: 6, kind: input, shape index: {}]
  %s7 = inlined_call_operand.vmem [shape: f32[200,16], index: 7, kind: output, shape index: {}]
  %s8 = sld [smem:[#allocation0]]
  $region38: #{tpu_custom_call.1} parent=0
    _
  %s10 = ssub.s32 1, %s8
  %s11 = scalar_select 0, %s10, %s8
  // Predicated region
  $region2: #{tpu_custom_call.1} parent=0 // pred_check
    _
  $region3: #{tpu_custom_call.1} parent=0 // pred_check_branch
    %13 = sbr.rel (0) target = $region5
  $region4: #{tpu_custom_call.1} parent=0 // pred_region
    _
  $region5: #{tpu_custom_call.1} parent=0 // pred_fallthru
    _
  // Predicated region
  $region6: #{tpu_custom_call.1} parent=0 // pred_check
    _
  $region7: #{tpu_custom_call.1} parent=0 // pred_check_branch
    %15 = sbr.rel (0) target = $region9
  $region8: #{tpu_custom_call.1} parent=0 // pred_region
    _
  $region9: #{tpu_custom_call.1} parent=0 // pred_fallthru
    _
  // Predicated region
  $region10: #{tpu_custom_call.1} parent=0 // pred_check
    _
  $region11: #{tpu_custom_call.1} parent=0 // pred_check_branch
    %17 = sbr.rel (0) target = $region13
  $region12: #{tpu_custom_call.1} parent=0 // pred_region
    _
  $region13: #{tpu_custom_call.1} parent=0 // pred_fallthru
    _
  // Predicated region
  $region14: #{tpu_custom_call.1} parent=0 // pred_check
    _
  $region15: #{tpu_custom_call.1} parent=0 // pred_check_branch
    %19 = sbr.rel (0) target = $region17
  $region16: #{tpu_custom_call.1} parent=0 // pred_region
    _
  $region17: #{tpu_custom_call.1} parent=0 // pred_fallthru
    _
  // Predicated region
  $region18: #{tpu_custom_call.1} parent=0 // pred_check
    _
  $region19: #{tpu_custom_call.1} parent=0 // pred_check_branch
    %21 = sbr.rel (0) target = $region21
  $region20: #{tpu_custom_call.1} parent=0 // pred_region
    _
  $region21: #{tpu_custom_call.1} parent=0 // pred_fallthru
    _
  // Predicated region
  $region22: #{tpu_custom_call.1} parent=0 // pred_check
    _
  $region23: #{tpu_custom_call.1} parent=0 // pred_check_branch
    %23 = sbr.rel (0) target = $region25
  $region24: #{tpu_custom_call.1} parent=0 // pred_region
    _
  $region25: #{tpu_custom_call.1} parent=0 // pred_fallthru
    _
  // Predicated region
  $region26: #{tpu_custom_call.1} parent=0 // pred_check
    _
  $region27: #{tpu_custom_call.1} parent=0 // pred_check_branch
    %25 = sbr.rel (0) target = $region29
  $region28: #{tpu_custom_call.1} parent=0 // pred_region
    _
  $region29: #{tpu_custom_call.1} parent=0 // pred_fallthru
    _
  %v26 = vld [vmem:[%s0] sm:$0xff]
  %v27 = vld [vmem:[%s0 + $0x8] sm:$0xff]
  %v28 = vld [vmem:[%s0 + $0x10] sm:$0xff]
  %v29 = vld [vmem:[%s0 + $0x18] sm:$0xff]
  %v30 = vld [vmem:[%s0 + $0x20] sm:$0xff]
  %v31 = vld [vmem:[%s0 + $0x28] sm:$0xff]
  %v32 = vld [vmem:[%s0 + $0x30] sm:$0xff]
  %v33 = vld [vmem:[%s0 + $0x38] sm:$0xff]
  %v34 = vld [vmem:[%s0 + $0x40] sm:$0xff]
  %v35 = vld [vmem:[%s0 + $0x48] sm:$0xff]
  %v36 = vld [vmem:[%s0 + $0x50] sm:$0xff]
  %v37 = vld [vmem:[%s0 + $0x58] sm:$0xff]
  %v38 = vld [vmem:[%s0 + $0x60] sm:$0xff]
  %v39 = vld [vmem:[%s0 + $0x68] sm:$0xff]
  %v40 = vld [vmem:[%s0 + $0x70] sm:$0xff]
  %v41 = vld [vmem:[%s0 + $0x78] sm:$0xff]
  %v42 = vld [vmem:[%s0 + $0x80] sm:$0xff]
  %v43 = vld [vmem:[%s0 + $0x88] sm:$0xff]
  %v44 = vld [vmem:[%s0 + $0x90] sm:$0xff]
  %v45 = vld [vmem:[%s0 + $0x98] sm:$0xff]
  %v46 = vld [vmem:[%s0 + $0xa0] sm:$0xff]
  %v47 = vld [vmem:[%s0 + $0xa8] sm:$0xff]
  %v48 = vld [vmem:[%s0 + $0xb0] sm:$0xff]
  %v49 = vld [vmem:[%s0 + $0xb8] sm:$0xff]
  %v50 = vld [vmem:[%s0 + $0xc0] sm:$0xff]
  %v51 = vld [vmem:[%s0 + $0xc8] sm:$0xff]
  %v52 = vld [vmem:[%s0 + $0xd0] sm:$0xff]
  %v53 = vld [vmem:[%s0 + $0xd8] sm:$0xff]
  %v54 = vld [vmem:[%s0 + $0xe0] sm:$0xff]
  %v55 = vld [vmem:[%s0 + $0xe8] sm:$0xff]
  %v56 = vld [vmem:[%s0 + $0xf0] sm:$0xff]
  %v57 = vld [vmem:[%s0 + $0xf8] sm:$0xff]
  %v58 = vld [vmem:[%s0 + $0x100] sm:$0xff]
  %v59 = vld [vmem:[%s0 + $0x108] sm:$0xff]
  %v60 = vld [vmem:[%s0 + $0x110] sm:$0xff]
  %v61 = vld [vmem:[%s0 + $0x118] sm:$0xff]
  %v62 = vld [vmem:[%s0 + $0x120] sm:$0xff]
  %v63 = vld [vmem:[%s0 + $0x128] sm:$0xff]
  %v64 = vld [vmem:[%s0 + $0x130] sm:$0xff]
  %v65 = vld [vmem:[%s0 + $0x138] sm:$0xff]
  %v66 = vld [vmem:[%s0 + $0x140] sm:$0xff]
  %v67 = vld [vmem:[%s0 + $0x148] sm:$0xff]
  %v68 = vld [vmem:[%s0 + $0x150] sm:$0xff]
  %v69 = vld [vmem:[%s0 + $0x158] sm:$0xff]
  %v70 = vld [vmem:[%s0 + $0x160] sm:$0xff]
  %v71 = vld [vmem:[%s0 + $0x168] sm:$0xff]
  %v72 = vld [vmem:[%s0 + $0x170] sm:$0xff]
  %v73 = vld [vmem:[%s0 + $0x178] sm:$0xff]
  %v74 = vld [vmem:[%s0 + $0x180] sm:$0xff]
  %v75 = vld [vmem:[%s0 + $0x188] sm:$0xff]
  %v76 = vld [vmem:[%s2] sm:$0xff]
  %v77 = vld [vmem:[%s2 + $0x8] sm:$0xff]
  %v78 = vld [vmem:[%s2 + $0x10] sm:$0xff]
  %v79 = vld [vmem:[%s2 + $0x18] sm:$0xff]
  %v80 = vld [vmem:[%s2 + $0x20] sm:$0xff]
  %v81 = vld [vmem:[%s2 + $0x28] sm:$0xff]
  %v82 = vld [vmem:[%s2 + $0x30] sm:$0xff]
  %v83 = vld [vmem:[%s2 + $0x38] sm:$0xff]
  %v84 = vld [vmem:[%s2 + $0x40] sm:$0xff]
  %v85 = vld [vmem:[%s2 + $0x48] sm:$0xff]
  %v86 = vld [vmem:[%s2 + $0x50] sm:$0xff]
  %v87 = vld [vmem:[%s2 + $0x58] sm:$0xff]
  %v88 = vld [vmem:[%s2 + $0x60] sm:$0xff]
  %v89 = vld [vmem:[%s2 + $0x68] sm:$0xff]
  %v90 = vld [vmem:[%s2 + $0x70] sm:$0xff]
  %v91 = vld [vmem:[%s2 + $0x78] sm:$0xff]
  %v92 = vld [vmem:[%s2 + $0x80] sm:$0xff]
  %v93 = vld [vmem:[%s2 + $0x88] sm:$0xff]
  %v94 = vld [vmem:[%s2 + $0x90] sm:$0xff]
  %v95 = vld [vmem:[%s2 + $0x98] sm:$0xff]
  %v96 = vld [vmem:[%s2 + $0xa0] sm:$0xff]
  %v97 = vld [vmem:[%s2 + $0xa8] sm:$0xff]
  %v98 = vld [vmem:[%s2 + $0xb0] sm:$0xff]
  %v99 = vld [vmem:[%s2 + $0xb8] sm:$0xff]
  %v100 = vld [vmem:[%s2 + $0xc0] sm:$0xff]
  %v101 = vld [vmem:[%s3] sm:$0x1]
  %v103 = vlaneseq
  %v104 = vshrl.u32 %v103, 7
  %v105 = vsub.s32 0, %v104
  %v106 = vrot.slane %v101, %v105
  %vm108 = vcmask 588800
  %v110 = vsel %vm108, %v27, 0
  %v113 = vsel %vm108, %v29, 0
  %v116 = vsel %vm108, %v31, 0
  %v119 = vsel %vm108, %v33, 0
  %v122 = vsel %vm108, %v35, 0
  %v125 = vsel %vm108, %v37, 0
  %v128 = vsel %vm108, %v39, 0
  %v131 = vsel %vm108, %v41, 0
  %v134 = vsel %vm108, %v43, 0
  %v137 = vsel %vm108, %v45, 0
  %v140 = vsel %vm108, %v47, 0
  %v143 = vsel %vm108, %v49, 0
  %v146 = vsel %vm108, %v51, 0
  %v149 = vsel %vm108, %v53, 0
  %v152 = vsel %vm108, %v55, 0
  %v155 = vsel %vm108, %v57, 0
  %v158 = vsel %vm108, %v59, 0
  %v161 = vsel %vm108, %v61, 0
  %v164 = vsel %vm108, %v63, 0
  %v167 = vsel %vm108, %v65, 0
  %v170 = vsel %vm108, %v67, 0
  %v173 = vsel %vm108, %v69, 0
  %v176 = vsel %vm108, %v71, 0
  %v179 = vsel %vm108, %v73, 0
  %v182 = vsel %vm108, %v75, 0
  %184 = vmatprep.subr.mxu0 0.0
  %185 = vmatpush1.msra.mxu0 %v91
  %186 = vmatprep.subr.mxu0 0.0
  %187 = vmatpush1.msra.mxu0 %v90
  %188 = vmatprep.subr.mxu0 0.0
  %189 = vmatpush1.msra.mxu0 %v89
  %190 = vmatprep.subr.mxu0 0.0
  %191 = vmatpush1.msra.mxu0 %v88
  %192 = vmatprep.subr.mxu0 0.0
  %193 = vmatpush1.msra.mxu0 %v87
  %194 = vmatprep.subr.mxu0 0.0
  %195 = vmatpush1.msra.mxu0 %v86
  %196 = vmatprep.subr.mxu0 0.0
  %197 = vmatpush1.msra.mxu0 %v85
  %198 = vmatprep.subr.mxu0 0.0
  %199 = vmatpush1.msra.mxu0 %v84
  %200 = vmatprep.subr.mxu0 0.0
  %201 = vmatpush1.msra.mxu0 %v83
  %202 = vmatprep.subr.mxu0 0.0
  %203 = vmatpush1.msra.mxu0 %v82
  %204 = vmatprep.subr.mxu0 0.0
  %205 = vmatpush1.msra.mxu0 %v81
  %206 = vmatprep.subr.mxu0 0.0
  %207 = vmatpush1.msra.mxu0 %v80
  %208 = vmatprep.subr.mxu0 0.0
  %209 = vmatpush1.msra.mxu0 %v79
  %210 = vmatprep.subr.mxu0 0.0
  %211 = vmatpush1.msra.mxu0 %v78
  %212 = vmatprep.subr.mxu0 0.0
  %213 = vmatpush1.msra.mxu0 %v77
  %214 = vmatprep.subr.mxu0 0.0
  %215 = vmatpush1.msra.mxu0 %v76
  %216 = vmatprep.subr.mxu0 0.0
  %217 = vmatpush2.msra.mxu0 0.0
  %218 = vmatprep.subr.mxu0 0.0
  %219 = vmatpush2.msra.mxu0 0.0
  %220 = vmatprep.subr.mxu0 0.0
  %221 = vmatpush2.msra.mxu0 0.0
  %222 = vmatprep.subr.mxu0 0.0
  %223 = vmatpush2.msra.mxu0 0.0
  %224 = vmatprep.subr.mxu0 0.0
  %225 = vmatpush2.msra.mxu0 0.0
  %226 = vmatprep.subr.mxu0 0.0
  %227 = vmatpush2.msra.mxu0 0.0
  %228 = vmatprep.subr.mxu0 0.0
  %229 = vmatpush2.msra.mxu0 0.0
  %230 = vmatprep.subr.mxu0 0.0
  %231 = vmatpush2.msra.mxu0 %v100
  %232 = vmatprep.subr.mxu0 0.0
  %233 = vmatpush2.msra.mxu0 %v99
  %234 = vmatprep.subr.mxu0 0.0
  %235 = vmatpush2.msra.mxu0 %v98
  %236 = vmatprep.subr.mxu0 0.0
  %237 = vmatpush2.msra.mxu0 %v97
  %238 = vmatprep.subr.mxu0 0.0
  %239 = vmatpush2.msra.mxu0 %v96
  %240 = vmatprep.subr.mxu0 0.0
  %241 = vmatpush2.msra.mxu0 %v95
  %242 = vmatprep.subr.mxu0 0.0
  %243 = vmatpush2.msra.mxu0 %v94
  %244 = vmatprep.subr.mxu0 0.0
  %245 = vmatpush2.msra.mxu0 %v93
  %246 = vmatprep.subr.mxu0 0.0
  %247 = vmatpush2.msra.mxu0 %v92
  %248 = vmatprep.mubr.f32.mxu0 %v110
  %249 = vmatmul.mubr.f32.gmra.mxu0 %v26
  %v250 = vpop.f32.mrf.mxu0
  %v251 = vadd.f32 %v106, %v250
  %v252 = vpop.f32.mrf.mxu0
  %253 = vmatprep.mubr.f32.mxu0 %v113
  %254 = vmatmul.mubr.f32.gmra.mxu0 %v28
  %v255 = vpop.f32.mrf.mxu0
  %v256 = vadd.f32 %v106, %v255
  %v257 = vpop.f32.mrf.mxu0
  %258 = vmatprep.mubr.f32.mxu0 %v116
  %259 = vmatmul.mubr.f32.gmra.mxu0 %v30
  %v260 = vpop.f32.mrf.mxu0
  %v261 = vadd.f32 %v106, %v260
  %v262 = vpop.f32.mrf.mxu0
  %263 = vmatprep.mubr.f32.mxu0 %v119
  %264 = vmatmul.mubr.f32.gmra.mxu0 %v32
  %v265 = vpop.f32.mrf.mxu0
  %v266 = vadd.f32 %v106, %v265
  %v267 = vpop.f32.mrf.mxu0
  %268 = vmatprep.mubr.f32.mxu0 %v122
  %269 = vmatmul.mubr.f32.gmra.mxu0 %v34
  %v270 = vpop.f32.mrf.mxu0
  %v271 = vadd.f32 %v106, %v270
  %v272 = vpop.f32.mrf.mxu0
  %273 = vmatprep.mubr.f32.mxu0 %v125
  %274 = vmatmul.mubr.f32.gmra.mxu0 %v36
  %v275 = vpop.f32.mrf.mxu0
  %v276 = vadd.f32 %v106, %v275
  %v277 = vpop.f32.mrf.mxu0
  %278 = vmatprep.mubr.f32.mxu0 %v128
  %279 = vmatmul.mubr.f32.gmra.mxu0 %v38
  %v280 = vpop.f32.mrf.mxu0
  %v281 = vadd.f32 %v106, %v280
  %v282 = vpop.f32.mrf.mxu0
  %283 = vmatprep.mubr.f32.mxu0 %v131
  %284 = vmatmul.mubr.f32.gmra.mxu0 %v40
  %v285 = vpop.f32.mrf.mxu0
  %v286 = vadd.f32 %v106, %v285
  %v287 = vpop.f32.mrf.mxu0
  %288 = vmatprep.mubr.f32.mxu0 %v134
  %289 = vmatmul.mubr.f32.gmra.mxu0 %v42
  %v290 = vpop.f32.mrf.mxu0
  %v291 = vadd.f32 %v106, %v290
  %v292 = vpop.f32.mrf.mxu0
  %293 = vmatprep.mubr.f32.mxu0 %v137
  %294 = vmatmul.mubr.f32.gmra.mxu0 %v44
  %v295 = vpop.f32.mrf.mxu0
  %v296 = vadd.f32 %v106, %v295
  %v297 = vpop.f32.mrf.mxu0
  %298 = vmatprep.mubr.f32.mxu0 %v140
  %299 = vmatmul.mubr.f32.gmra.mxu0 %v46
  %v300 = vpop.f32.mrf.mxu0
  %v301 = vadd.f32 %v106, %v300
  %v302 = vpop.f32.mrf.mxu0
  %303 = vmatprep.mubr.f32.mxu0 %v143
  %304 = vmatmul.mubr.f32.gmra.mxu0 %v48
  %v305 = vpop.f32.mrf.mxu0
  %v306 = vadd.f32 %v106, %v305
  %v307 = vpop.f32.mrf.mxu0
  %308 = vmatprep.mubr.f32.mxu0 %v146
  %309 = vmatmul.mubr.f32.gmra.mxu0 %v50
  %v310 = vpop.f32.mrf.mxu0
  %v311 = vadd.f32 %v106, %v310
  %v312 = vpop.f32.mrf.mxu0
  %313 = vmatprep.mubr.f32.mxu0 %v149
  %314 = vmatmul.mubr.f32.gmra.mxu0 %v52
  %v315 = vpop.f32.mrf.mxu0
  %v316 = vadd.f32 %v106, %v315
  %v317 = vpop.f32.mrf.mxu0
  %318 = vmatprep.mubr.f32.mxu0 %v152
  %319 = vmatmul.mubr.f32.gmra.mxu0 %v54
  %v320 = vpop.f32.mrf.mxu0
  %v321 = vadd.f32 %v106, %v320
  %v322 = vpop.f32.mrf.mxu0
  %323 = vmatprep.mubr.f32.mxu0 %v155
  %324 = vmatmul.mubr.f32.gmra.mxu0 %v56
  %v325 = vpop.f32.mrf.mxu0
  %v326 = vadd.f32 %v106, %v325
  %v327 = vpop.f32.mrf.mxu0
  %328 = vmatprep.mubr.f32.mxu0 %v158
  %329 = vmatmul.mubr.f32.gmra.mxu0 %v58
  %v330 = vpop.f32.mrf.mxu0
  %v331 = vadd.f32 %v106, %v330
  %v332 = vpop.f32.mrf.mxu0
  %333 = vmatprep.mubr.f32.mxu0 %v161
  %334 = vmatmul.mubr.f32.gmra.mxu0 %v60
  %v335 = vpop.f32.mrf.mxu0
  %v336 = vadd.f32 %v106, %v335
  %v337 = vpop.f32.mrf.mxu0
  %338 = vmatprep.mubr.f32.mxu0 %v164
  %339 = vmatmul.mubr.f32.gmra.mxu0 %v62
  %v340 = vpop.f32.mrf.mxu0
  %v341 = vadd.f32 %v106, %v340
  %v342 = vpop.f32.mrf.mxu0
  %343 = vmatprep.mubr.f32.mxu0 %v167
  %344 = vmatmul.mubr.f32.gmra.mxu0 %v64
  %v345 = vpop.f32.mrf.mxu0
  %v346 = vadd.f32 %v106, %v345
  %v347 = vpop.f32.mrf.mxu0
  %348 = vmatprep.mubr.f32.mxu0 %v170
  %349 = vmatmul.mubr.f32.gmra.mxu0 %v66
  %v350 = vpop.f32.mrf.mxu0
  %v351 = vadd.f32 %v106, %v350
  %v352 = vpop.f32.mrf.mxu0
  %353 = vmatprep.mubr.f32.mxu0 %v173
  %354 = vmatmul.mubr.f32.gmra.mxu0 %v68
  %v355 = vpop.f32.mrf.mxu0
  %v356 = vadd.f32 %v106, %v355
  %v357 = vpop.f32.mrf.mxu0
  %358 = vmatprep.mubr.f32.mxu0 %v176
  %359 = vmatmul.mubr.f32.gmra.mxu0 %v70
  %v360 = vpop.f32.mrf.mxu0
  %v361 = vadd.f32 %v106, %v360
  %v362 = vpop.f32.mrf.mxu0
  %363 = vmatprep.mubr.f32.mxu0 %v179
  %364 = vmatmul.mubr.f32.gmra.mxu0 %v72
  %v365 = vpop.f32.mrf.mxu0
  %v366 = vadd.f32 %v106, %v365
  %v367 = vpop.f32.mrf.mxu0
  %368 = vmatprep.mubr.f32.mxu0 %v182
  %369 = vmatmul.mubr.f32.gmra.mxu0 %v74
  %v370 = vpop.f32.mrf.mxu0
  %v371 = vadd.f32 %v106, %v370
  %v372 = vpop.f32.mrf.mxu0
  %373 = vdwg.mxu0
  %v374 = vmax.f32 %v251, 0.0
  %v375 = vmax.f32 %v256, 0.0
  %v376 = vmax.f32 %v261, 0.0
  %v377 = vmax.f32 %v266, 0.0
  %v378 = vmax.f32 %v271, 0.0
  %v379 = vmax.f32 %v276, 0.0
  %v380 = vmax.f32 %v281, 0.0
  %v381 = vmax.f32 %v286, 0.0
  %v382 = vmax.f32 %v291, 0.0
  %v383 = vmax.f32 %v296, 0.0
  %v384 = vmax.f32 %v301, 0.0
  %v385 = vmax.f32 %v306, 0.0
  %v386 = vmax.f32 %v311, 0.0
  %v387 = vmax.f32 %v316, 0.0
  %v388 = vmax.f32 %v321, 0.0
  %v389 = vmax.f32 %v326, 0.0
  %v390 = vmax.f32 %v331, 0.0
  %v391 = vmax.f32 %v336, 0.0
  %v392 = vmax.f32 %v341, 0.0
  %v393 = vmax.f32 %v346, 0.0
  %v394 = vmax.f32 %v351, 0.0
  %v395 = vmax.f32 %v356, 0.0
  %v396 = vmax.f32 %v361, 0.0
  %v397 = vmax.f32 %v366, 0.0
  %v398 = vmax.f32 %v371, 0.0
  %v399 = vld [vmem:[%s4] sm:$0xff]
  %v400 = vld [vmem:[%s4 + $0x8] sm:$0xff]
  %v401 = vld [vmem:[%s4 + $0x10] sm:$0xf]
  %v402 = vld [vmem:[%s1] sm:$0xff]
  %v403 = vld [vmem:[%s1 + $0x8] sm:$0xff]
  %v404 = vld [vmem:[%s1 + $0x10] sm:$0xff]
  %v405 = vld [vmem:[%s1 + $0x18] sm:$0xff]
  %v406 = vld [vmem:[%s1 + $0x20] sm:$0xff]
  %v407 = vld [vmem:[%s1 + $0x28] sm:$0xff]
  %v408 = vld [vmem:[%s1 + $0x30] sm:$0xff]
  %v409 = vld [vmem:[%s1 + $0x38] sm:$0xff]
  %v410 = vld [vmem:[%s1 + $0x40] sm:$0xff]
  %v411 = vld [vmem:[%s1 + $0x48] sm:$0xff]
  %v412 = vld [vmem:[%s1 + $0x50] sm:$0xff]
  %v413 = vld [vmem:[%s1 + $0x58] sm:$0xff]
  %v414 = vld [vmem:[%s1 + $0x60] sm:$0xff]
  %v415 = vld [vmem:[%s1 + $0x68] sm:$0xff]
  %v416 = vld [vmem:[%s1 + $0x70] sm:$0xff]
  %v417 = vld [vmem:[%s1 + $0x78] sm:$0xff]
  %v418 = vld [vmem:[%s1 + $0x80] sm:$0xff]
  %v419 = vld [vmem:[%s1 + $0x88] sm:$0xff]
  %v420 = vld [vmem:[%s1 + $0x90] sm:$0xff]
  %v421 = vld [vmem:[%s1 + $0x98] sm:$0xff]
  %v422 = vld [vmem:[%s1 + $0xa0] sm:$0xff]
  %v423 = vld [vmem:[%s1 + $0xa8] sm:$0xff]
  %v424 = vld [vmem:[%s1 + $0xb0] sm:$0xff]
  %v425 = vld [vmem:[%s1 + $0xb8] sm:$0xff]
  %v426 = vld [vmem:[%s1 + $0xc0] sm:$0xff]
  %v427 = vld [vmem:[%s5] sm:$0x1f]
  %vm428 = vcmask 39936
  %v430 = vsel %vm428, %v402, 0
  %v433 = vsel %vm428, %v403, 0
  %v436 = vsel %vm428, %v404, 0
  %v439 = vsel %vm428, %v405, 0
  %v442 = vsel %vm428, %v406, 0
  %v445 = vsel %vm428, %v407, 0
  %v448 = vsel %vm428, %v408, 0
  %v451 = vsel %vm428, %v409, 0
  %v454 = vsel %vm428, %v410, 0
  %v457 = vsel %vm428, %v411, 0
  %v460 = vsel %vm428, %v412, 0
  %v463 = vsel %vm428, %v413, 0
  %v466 = vsel %vm428, %v414, 0
  %v469 = vsel %vm428, %v415, 0
  %v472 = vsel %vm428, %v416, 0
  %v475 = vsel %vm428, %v417, 0
  %v478 = vsel %vm428, %v418, 0
  %v481 = vsel %vm428, %v419, 0
  %v484 = vsel %vm428, %v420, 0
  %v487 = vsel %vm428, %v421, 0
  %v490 = vsel %vm428, %v422, 0
  %v493 = vsel %vm428, %v423, 0
  %v496 = vsel %vm428, %v424, 0
  %v499 = vsel %vm428, %v425, 0
  %v502 = vsel %vm428, %v426, 0
  %vm504 = vcmask 1044480
  %v506 = vsel %vm504, %v427, 0
  %508 = vmatprep.subr.mxu0 0.0
  %509 = vmatpush1.msra.mxu0 0.0
  %510 = vmatprep.subr.mxu0 0.0
  %511 = vmatpush1.msra.mxu0 0.0
  %512 = vmatprep.subr.mxu0 0.0
  %513 = vmatpush1.msra.mxu0 0.0
  %514 = vmatprep.subr.mxu0 0.0
  %515 = vmatpush1.msra.mxu0 0.0
  %516 = vmatprep.subr.mxu0 0.0
  %517 = vmatpush1.msra.mxu0 0.0
  %518 = vmatprep.subr.mxu0 0.0
  %519 = vmatpush1.msra.mxu0 0.0
  %520 = vmatprep.subr.mxu0 0.0
  %521 = vmatpush1.msra.mxu0 0.0
  %522 = vmatprep.subr.mxu0 0.0
  %523 = vmatpush1.msra.mxu0 0.0
  %524 = vmatprep.subr.mxu0 0.0
  %525 = vmatpush1.msra.mxu0 0.0
  %526 = vmatprep.subr.mxu0 0.0
  %527 = vmatpush1.msra.mxu0 0.0
  %528 = vmatprep.subr.mxu0 0.0
  %529 = vmatpush1.msra.mxu0 0.0
  %530 = vmatprep.subr.mxu0 0.0
  %531 = vmatpush1.msra.mxu0 0.0
  %532 = vmatprep.subr.mxu0 0.0
  %533 = vmatpush1.msra.mxu0 0.0
  %534 = vmatprep.subr.mxu0 0.0
  %535 = vmatpush1.msra.mxu0 0.0
  %536 = vmatprep.subr.mxu0 0.0
  %537 = vmatpush1.msra.mxu0 0.0
  %538 = vmatprep.subr.mxu0 0.0
  %539 = vmatpush1.msra.mxu0 %v506
  %540 = vmatprep.subr.mxu0 0.0
  %541 = vmatpush2.msra.mxu0 0.0
  %542 = vmatprep.subr.mxu0 0.0
  %543 = vmatpush2.msra.mxu0 0.0
  %544 = vmatprep.subr.mxu0 0.0
  %545 = vmatpush2.msra.mxu0 0.0
  %546 = vmatprep.subr.mxu0 0.0
  %547 = vmatpush2.msra.mxu0 0.0
  %548 = vmatprep.subr.mxu0 0.0
  %549 = vmatpush2.msra.mxu0 0.0
  %550 = vmatprep.subr.mxu0 0.0
  %551 = vmatpush2.msra.mxu0 0.0
  %552 = vmatprep.subr.mxu0 0.0
  %553 = vmatpush2.msra.mxu0 0.0
  %554 = vmatprep.subr.mxu0 0.0
  %555 = vmatpush2.msra.mxu0 0.0
  %556 = vmatprep.subr.mxu0 0.0
  %557 = vmatpush2.msra.mxu0 0.0
  %558 = vmatprep.subr.mxu0 0.0
  %559 = vmatpush2.msra.mxu0 0.0
  %560 = vmatprep.subr.mxu0 0.0
  %561 = vmatpush2.msra.mxu0 0.0
  %562 = vmatprep.subr.mxu0 0.0
  %563 = vmatpush2.msra.mxu0 0.0
  %564 = vmatprep.subr.mxu0 0.0
  %565 = vmatpush2.msra.mxu0 0.0
  %566 = vmatprep.subr.mxu0 0.0
  %567 = vmatpush2.msra.mxu0 0.0
  %568 = vmatprep.subr.mxu0 0.0
  %569 = vmatpush2.msra.mxu0 0.0
  %570 = vmatprep.subr.mxu0 0.0
  %571 = vmatpush2.msra.mxu0 0.0
  %572 = vmatprep.mubr.f32.mxu0 0.0
  %573 = vmatmul.mubr.f32.gmra.mxu0 %v430
  %v574 = vpop.f32.mrf.mxu0
  %v575 = vadd.f32 0.0, %v574
  %v576 = vpop.f32.mrf.mxu0
  %577 = vmatprep.mubr.f32.mxu0 0.0
  %578 = vmatmul.mubr.f32.gmra.mxu0 %v433
  %v579 = vpop.f32.mrf.mxu0
  %v580 = vadd.f32 0.0, %v579
  %v581 = vpop.f32.mrf.mxu0
  %582 = vmatprep.mubr.f32.mxu0 0.0
  %583 = vmatmul.mubr.f32.gmra.mxu0 %v436
  %v584 = vpop.f32.mrf.mxu0
  %v585 = vadd.f32 0.0, %v584
  %v586 = vpop.f32.mrf.mxu0
  %587 = vmatprep.mubr.f32.mxu0 0.0
  %588 = vmatmul.mubr.f32.gmra.mxu0 %v439
  %v589 = vpop.f32.mrf.mxu0
  %v590 = vadd.f32 0.0, %v589
  %v591 = vpop.f32.mrf.mxu0
  %592 = vmatprep.mubr.f32.mxu0 0.0
  %593 = vmatmul.mubr.f32.gmra.mxu0 %v442
  %v594 = vpop.f32.mrf.mxu0
  %v595 = vadd.f32 0.0, %v594
  %v596 = vpop.f32.mrf.mxu0
  %597 = vmatprep.mubr.f32.mxu0 0.0
  %598 = vmatmul.mubr.f32.gmra.mxu0 %v445
  %v599 = vpop.f32.mrf.mxu0
  %v600 = vadd.f32 0.0, %v599
  %v601 = vpop.f32.mrf.mxu0
  %602 = vmatprep.mubr.f32.mxu0 0.0
  %603 = vmatmul.mubr.f32.gmra.mxu0 %v448
  %v604 = vpop.f32.mrf.mxu0
  %v605 = vadd.f32 0.0, %v604
  %v606 = vpop.f32.mrf.mxu0
  %607 = vmatprep.mubr.f32.mxu0 0.0
  %608 = vmatmul.mubr.f32.gmra.mxu0 %v451
  %v609 = vpop.f32.mrf.mxu0
  %v610 = vadd.f32 0.0, %v609
  %v611 = vpop.f32.mrf.mxu0
  %612 = vmatprep.mubr.f32.mxu0 0.0
  %613 = vmatmul.mubr.f32.gmra.mxu0 %v454
  %v614 = vpop.f32.mrf.mxu0
  %v615 = vadd.f32 0.0, %v614
  %v616 = vpop.f32.mrf.mxu0
  %617 = vmatprep.mubr.f32.mxu0 0.0
  %618 = vmatmul.mubr.f32.gmra.mxu0 %v457
  %v619 = vpop.f32.mrf.mxu0
  %v620 = vadd.f32 0.0, %v619
  %v621 = vpop.f32.mrf.mxu0
  %622 = vmatprep.mubr.f32.mxu0 0.0
  %623 = vmatmul.mubr.f32.gmra.mxu0 %v460
  %v624 = vpop.f32.mrf.mxu0
  %v625 = vadd.f32 0.0, %v624
  %v626 = vpop.f32.mrf.mxu0
  %627 = vmatprep.mubr.f32.mxu0 0.0
  %628 = vmatmul.mubr.f32.gmra.mxu0 %v463
  %v629 = vpop.f32.mrf.mxu0
  %v630 = vadd.f32 0.0, %v629
  %v631 = vpop.f32.mrf.mxu0
  %632 = vmatprep.mubr.f32.mxu0 0.0
  %633 = vmatmul.mubr.f32.gmra.mxu0 %v466
  %v634 = vpop.f32.mrf.mxu0
  %v635 = vadd.f32 0.0, %v634
  %v636 = vpop.f32.mrf.mxu0
  %637 = vmatprep.mubr.f32.mxu0 0.0
  %638 = vmatmul.mubr.f32.gmra.mxu0 %v469
  %v639 = vpop.f32.mrf.mxu0
  %v640 = vadd.f32 0.0, %v639
  %v641 = vpop.f32.mrf.mxu0
  %642 = vmatprep.mubr.f32.mxu0 0.0
  %643 = vmatmul.mubr.f32.gmra.mxu0 %v472
  %v644 = vpop.f32.mrf.mxu0
  %v645 = vadd.f32 0.0, %v644
  %v646 = vpop.f32.mrf.mxu0
  %647 = vmatprep.mubr.f32.mxu0 0.0
  %648 = vmatmul.mubr.f32.gmra.mxu0 %v475
  %v649 = vpop.f32.mrf.mxu0
  %v650 = vadd.f32 0.0, %v649
  %v651 = vpop.f32.mrf.mxu0
  %652 = vmatprep.mubr.f32.mxu0 0.0
  %653 = vmatmul.mubr.f32.gmra.mxu0 %v478
  %v654 = vpop.f32.mrf.mxu0
  %v655 = vadd.f32 0.0, %v654
  %v656 = vpop.f32.mrf.mxu0
  %657 = vmatprep.mubr.f32.mxu0 0.0
  %658 = vmatmul.mubr.f32.gmra.mxu0 %v481
  %v659 = vpop.f32.mrf.mxu0
  %v660 = vadd.f32 0.0, %v659
  %v661 = vpop.f32.mrf.mxu0
  %662 = vmatprep.mubr.f32.mxu0 0.0
  %663 = vmatmul.mubr.f32.gmra.mxu0 %v484
  %v664 = vpop.f32.mrf.mxu0
  %v665 = vadd.f32 0.0, %v664
  %v666 = vpop.f32.mrf.mxu0
  %667 = vmatprep.mubr.f32.mxu0 0.0
  %668 = vmatmul.mubr.f32.gmra.mxu0 %v487
  %v669 = vpop.f32.mrf.mxu0
  %v670 = vadd.f32 0.0, %v669
  %v671 = vpop.f32.mrf.mxu0
  %672 = vmatprep.mubr.f32.mxu0 0.0
  %673 = vmatmul.mubr.f32.gmra.mxu0 %v490
  %v674 = vpop.f32.mrf.mxu0
  %v675 = vadd.f32 0.0, %v674
  %v676 = vpop.f32.mrf.mxu0
  %677 = vmatprep.mubr.f32.mxu0 0.0
  %678 = vmatmul.mubr.f32.gmra.mxu0 %v493
  %v679 = vpop.f32.mrf.mxu0
  %v680 = vadd.f32 0.0, %v679
  %v681 = vpop.f32.mrf.mxu0
  %682 = vmatprep.mubr.f32.mxu0 0.0
  %683 = vmatmul.mubr.f32.gmra.mxu0 %v496
  %v684 = vpop.f32.mrf.mxu0
  %v685 = vadd.f32 0.0, %v684
  %v686 = vpop.f32.mrf.mxu0
  %687 = vmatprep.mubr.f32.mxu0 0.0
  %688 = vmatmul.mubr.f32.gmra.mxu0 %v499
  %v689 = vpop.f32.mrf.mxu0
  %v690 = vadd.f32 0.0, %v689
  %v691 = vpop.f32.mrf.mxu0
  %692 = vmatprep.mubr.f32.mxu0 0.0
  %693 = vmatmul.mubr.f32.gmra.mxu0 %v502
  %v694 = vpop.f32.mrf.mxu0
  %v695 = vadd.f32 0.0, %v694
  %v696 = vpop.f32.mrf.mxu0
  %697 = vdwg.mxu0
  %vm698 = vcmask 162816
  %v700 = vsel %vm698, %v374, 0
  %v703 = vsel %vm698, %v375, 0
  %v706 = vsel %vm698, %v376, 0
  %v709 = vsel %vm698, %v377, 0
  %v712 = vsel %vm698, %v378, 0
  %v715 = vsel %vm698, %v379, 0
  %v718 = vsel %vm698, %v380, 0
  %v721 = vsel %vm698, %v381, 0
  %v724 = vsel %vm698, %v382, 0
  %v727 = vsel %vm698, %v383, 0
  %v730 = vsel %vm698, %v384, 0
  %v733 = vsel %vm698, %v385, 0
  %v736 = vsel %vm698, %v386, 0
  %v739 = vsel %vm698, %v387, 0
  %v742 = vsel %vm698, %v388, 0
  %v745 = vsel %vm698, %v389, 0
  %v748 = vsel %vm698, %v390, 0
  %v751 = vsel %vm698, %v391, 0
  %v754 = vsel %vm698, %v392, 0
  %v757 = vsel %vm698, %v393, 0
  %v760 = vsel %vm698, %v394, 0
  %v763 = vsel %vm698, %v395, 0
  %v766 = vsel %vm698, %v396, 0
  %v769 = vsel %vm698, %v397, 0
  %v772 = vsel %vm698, %v398, 0
  %vm774 = vcmask 1043456
  %v776 = vsel %vm774, %v401, 0
  %778 = vmatprep.subr.mxu0 0.0
  %779 = vmatpush1.msra.mxu0 0.0
  %780 = vmatprep.subr.mxu0 0.0
  %781 = vmatpush1.msra.mxu0 0.0
  %782 = vmatprep.subr.mxu0 0.0
  %783 = vmatpush1.msra.mxu0 0.0
  %784 = vmatprep.subr.mxu0 0.0
  %785 = vmatpush1.msra.mxu0 0.0
  %786 = vmatprep.subr.mxu0 0.0
  %787 = vmatpush1.msra.mxu0 0.0
  %788 = vmatprep.subr.mxu0 0.0
  %789 = vmatpush1.msra.mxu0 0.0
  %790 = vmatprep.subr.mxu0 0.0
  %791 = vmatpush1.msra.mxu0 0.0
  %792 = vmatprep.subr.mxu0 0.0
  %793 = vmatpush1.msra.mxu0 0.0
  %794 = vmatprep.subr.mxu0 0.0
  %795 = vmatpush1.msra.mxu0 0.0
  %796 = vmatprep.subr.mxu0 0.0
  %797 = vmatpush1.msra.mxu0 0.0
  %798 = vmatprep.subr.mxu0 0.0
  %799 = vmatpush1.msra.mxu0 0.0
  %800 = vmatprep.subr.mxu0 0.0
  %801 = vmatpush1.msra.mxu0 0.0
  %802 = vmatprep.subr.mxu0 0.0
  %803 = vmatpush1.msra.mxu0 0.0
  %804 = vmatprep.subr.mxu0 0.0
  %805 = vmatpush1.msra.mxu0 %v776
  %806 = vmatprep.subr.mxu0 0.0
  %807 = vmatpush1.msra.mxu0 %v400
  %808 = vmatprep.subr.mxu0 0.0
  %809 = vmatpush1.msra.mxu0 %v399
  %810 = vmatprep.subr.mxu0 0.0
  %811 = vmatpush2.msra.mxu0 0.0
  %812 = vmatprep.subr.mxu0 0.0
  %813 = vmatpush2.msra.mxu0 0.0
  %814 = vmatprep.subr.mxu0 0.0
  %815 = vmatpush2.msra.mxu0 0.0
  %816 = vmatprep.subr.mxu0 0.0
  %817 = vmatpush2.msra.mxu0 0.0
  %818 = vmatprep.subr.mxu0 0.0
  %819 = vmatpush2.msra.mxu0 0.0
  %820 = vmatprep.subr.mxu0 0.0
  %821 = vmatpush2.msra.mxu0 0.0
  %822 = vmatprep.subr.mxu0 0.0
  %823 = vmatpush2.msra.mxu0 0.0
  %824 = vmatprep.subr.mxu0 0.0
  %825 = vmatpush2.msra.mxu0 0.0
  %826 = vmatprep.subr.mxu0 0.0
  %827 = vmatpush2.msra.mxu0 0.0
  %828 = vmatprep.subr.mxu0 0.0
  %829 = vmatpush2.msra.mxu0 0.0
  %830 = vmatprep.subr.mxu0 0.0
  %831 = vmatpush2.msra.mxu0 0.0
  %832 = vmatprep.subr.mxu0 0.0
  %833 = vmatpush2.msra.mxu0 0.0
  %834 = vmatprep.subr.mxu0 0.0
  %835 = vmatpush2.msra.mxu0 0.0
  %836 = vmatprep.subr.mxu0 0.0
  %837 = vmatpush2.msra.mxu0 0.0
  %838 = vmatprep.subr.mxu0 0.0
  %839 = vmatpush2.msra.mxu0 0.0
  %840 = vmatprep.subr.mxu0 0.0
  %841 = vmatpush2.msra.mxu0 0.0
  %842 = vmatprep.mubr.f32.mxu0 0.0
  %843 = vmatmul.mubr.f32.gmra.mxu0 %v700
  %v844 = vpop.f32.mrf.mxu0
  %v845 = vadd.f32 %v575, %v844
  %v846 = vpop.f32.mrf.mxu0
  %847 = vmatprep.mubr.f32.mxu0 0.0
  %848 = vmatmul.mubr.f32.gmra.mxu0 %v703
  %v849 = vpop.f32.mrf.mxu0
  %v850 = vadd.f32 %v580, %v849
  %v851 = vpop.f32.mrf.mxu0
  %852 = vmatprep.mubr.f32.mxu0 0.0
  %853 = vmatmul.mubr.f32.gmra.mxu0 %v706
  %v854 = vpop.f32.mrf.mxu0
  %v855 = vadd.f32 %v585, %v854
  %v856 = vpop.f32.mrf.mxu0
  %857 = vmatprep.mubr.f32.mxu0 0.0
  %858 = vmatmul.mubr.f32.gmra.mxu0 %v709
  %v859 = vpop.f32.mrf.mxu0
  %v860 = vadd.f32 %v590, %v859
  %v861 = vpop.f32.mrf.mxu0
  %862 = vmatprep.mubr.f32.mxu0 0.0
  %863 = vmatmul.mubr.f32.gmra.mxu0 %v712
  %v864 = vpop.f32.mrf.mxu0
  %v865 = vadd.f32 %v595, %v864
  %v866 = vpop.f32.mrf.mxu0
  %867 = vmatprep.mubr.f32.mxu0 0.0
  %868 = vmatmul.mubr.f32.gmra.mxu0 %v715
  %v869 = vpop.f32.mrf.mxu0
  %v870 = vadd.f32 %v600, %v869
  %v871 = vpop.f32.mrf.mxu0
  %872 = vmatprep.mubr.f32.mxu0 0.0
  %873 = vmatmul.mubr.f32.gmra.mxu0 %v718
  %v874 = vpop.f32.mrf.mxu0
  %v875 = vadd.f32 %v605, %v874
  %v876 = vpop.f32.mrf.mxu0
  %877 = vmatprep.mubr.f32.mxu0 0.0
  %878 = vmatmul.mubr.f32.gmra.mxu0 %v721
  %v879 = vpop.f32.mrf.mxu0
  %v880 = vadd.f32 %v610, %v879
  %v881 = vpop.f32.mrf.mxu0
  %882 = vmatprep.mubr.f32.mxu0 0.0
  %883 = vmatmul.mubr.f32.gmra.mxu0 %v724
  %v884 = vpop.f32.mrf.mxu0
  %v885 = vadd.f32 %v615, %v884
  %v886 = vpop.f32.mrf.mxu0
  %887 = vmatprep.mubr.f32.mxu0 0.0
  %888 = vmatmul.mubr.f32.gmra.mxu0 %v727
  %v889 = vpop.f32.mrf.mxu0
  %v890 = vadd.f32 %v620, %v889
  %v891 = vpop.f32.mrf.mxu0
  %892 = vmatprep.mubr.f32.mxu0 0.0
  %893 = vmatmul.mubr.f32.gmra.mxu0 %v730
  %v894 = vpop.f32.mrf.mxu0
  %v895 = vadd.f32 %v625, %v894
  %v896 = vpop.f32.mrf.mxu0
  %897 = vmatprep.mubr.f32.mxu0 0.0
  %898 = vmatmul.mubr.f32.gmra.mxu0 %v733
  %v899 = vpop.f32.mrf.mxu0
  %v900 = vadd.f32 %v630, %v899
  %v901 = vpop.f32.mrf.mxu0
  %902 = vmatprep.mubr.f32.mxu0 0.0
  %903 = vmatmul.mubr.f32.gmra.mxu0 %v736
  %v904 = vpop.f32.mrf.mxu0
  %v905 = vadd.f32 %v635, %v904
  %v906 = vpop.f32.mrf.mxu0
  %907 = vmatprep.mubr.f32.mxu0 0.0
  %908 = vmatmul.mubr.f32.gmra.mxu0 %v739
  %v909 = vpop.f32.mrf.mxu0
  %v910 = vadd.f32 %v640, %v909
  %v911 = vpop.f32.mrf.mxu0
  %912 = vmatprep.mubr.f32.mxu0 0.0
  %913 = vmatmul.mubr.f32.gmra.mxu0 %v742
  %v914 = vpop.f32.mrf.mxu0
  %v915 = vadd.f32 %v645, %v914
  %v916 = vpop.f32.mrf.mxu0
  %917 = vmatprep.mubr.f32.mxu0 0.0
  %918 = vmatmul.mubr.f32.gmra.mxu0 %v745
  %v919 = vpop.f32.mrf.mxu0
  %v920 = vadd.f32 %v650, %v919
  %v921 = vpop.f32.mrf.mxu0
  %922 = vmatprep.mubr.f32.mxu0 0.0
  %923 = vmatmul.mubr.f32.gmra.mxu0 %v748
  %v924 = vpop.f32.mrf.mxu0
  %v925 = vadd.f32 %v655, %v924
  %v926 = vpop.f32.mrf.mxu0
  %927 = vmatprep.mubr.f32.mxu0 0.0
  %928 = vmatmul.mubr.f32.gmra.mxu0 %v751
  %v929 = vpop.f32.mrf.mxu0
  %v930 = vadd.f32 %v660, %v929
  %v931 = vpop.f32.mrf.mxu0
  %932 = vmatprep.mubr.f32.mxu0 0.0
  %933 = vmatmul.mubr.f32.gmra.mxu0 %v754
  %v934 = vpop.f32.mrf.mxu0
  %v935 = vadd.f32 %v665, %v934
  %v936 = vpop.f32.mrf.mxu0
  %937 = vmatprep.mubr.f32.mxu0 0.0
  %938 = vmatmul.mubr.f32.gmra.mxu0 %v757
  %v939 = vpop.f32.mrf.mxu0
  %v940 = vadd.f32 %v670, %v939
  %v941 = vpop.f32.mrf.mxu0
  %942 = vmatprep.mubr.f32.mxu0 0.0
  %943 = vmatmul.mubr.f32.gmra.mxu0 %v760
  %v944 = vpop.f32.mrf.mxu0
  %v945 = vadd.f32 %v675, %v944
  %v946 = vpop.f32.mrf.mxu0
  %947 = vmatprep.mubr.f32.mxu0 0.0
  %948 = vmatmul.mubr.f32.gmra.mxu0 %v763
  %v949 = vpop.f32.mrf.mxu0
  %v950 = vadd.f32 %v680, %v949
  %v951 = vpop.f32.mrf.mxu0
  %952 = vmatprep.mubr.f32.mxu0 0.0
  %953 = vmatmul.mubr.f32.gmra.mxu0 %v766
  %v954 = vpop.f32.mrf.mxu0
  %v955 = vadd.f32 %v685, %v954
  %v956 = vpop.f32.mrf.mxu0
  %957 = vmatprep.mubr.f32.mxu0 0.0
  %958 = vmatmul.mubr.f32.gmra.mxu0 %v769
  %v959 = vpop.f32.mrf.mxu0
  %v960 = vadd.f32 %v690, %v959
  %v961 = vpop.f32.mrf.mxu0
  %962 = vmatprep.mubr.f32.mxu0 0.0
  %963 = vmatmul.mubr.f32.gmra.mxu0 %v772
  %v964 = vpop.f32.mrf.mxu0
  %v965 = vadd.f32 %v695, %v964
  %v966 = vpop.f32.mrf.mxu0
  %967 = vdwg.mxu0
  %v968 = vld [vmem:[%s6] sm:$0x1]
  %v970 = vlaneseq
  %v971 = vshrl.u32 %v970, 7
  %v972 = vsub.s32 0, %v971
  %v973 = vrot.slane %v968, %v972
  %v975 = vadd.f32 %v845, %v973
  %v976 = vadd.f32 %v850, %v973
  %v977 = vadd.f32 %v855, %v973
  %v978 = vadd.f32 %v860, %v973
  %v979 = vadd.f32 %v865, %v973
  %v980 = vadd.f32 %v870, %v973
  %v981 = vadd.f32 %v875, %v973
  %v982 = vadd.f32 %v880, %v973
  %v983 = vadd.f32 %v885, %v973
  %v984 = vadd.f32 %v890, %v973
  %v985 = vadd.f32 %v895, %v973
  %v986 = vadd.f32 %v900, %v973
  %v987 = vadd.f32 %v905, %v973
  %v988 = vadd.f32 %v910, %v973
  %v989 = vadd.f32 %v915, %v973
  %v990 = vadd.f32 %v920, %v973
  %v991 = vadd.f32 %v925, %v973
  %v992 = vadd.f32 %v930, %v973
  %v993 = vadd.f32 %v935, %v973
  %v994 = vadd.f32 %v940, %v973
  %v995 = vadd.f32 %v945, %v973
  %v996 = vadd.f32 %v950, %v973
  %v997 = vadd.f32 %v955, %v973
  %v998 = vadd.f32 %v960, %v973
  %v999 = vadd.f32 %v965, %v973
  %vm1000 = vcmask 130048
  %1001 = vst.msk [vmem:[%s7] sm:$0xff] %vm1000, %v975
  %1002 = vst.msk [vmem:[%s7 + $0x8] sm:$0xff] %vm1000, %v976
  %1003 = vst.msk [vmem:[%s7 + $0x10] sm:$0xff] %vm1000, %v977
  %1004 = vst.msk [vmem:[%s7 + $0x18] sm:$0xff] %vm1000, %v978
  %1005 = vst.msk [vmem:[%s7 + $0x20] sm:$0xff] %vm1000, %v979
  %1006 = vst.msk [vmem:[%s7 + $0x28] sm:$0xff] %vm1000, %v980
  %1007 = vst.msk [vmem:[%s7 + $0x30] sm:$0xff] %vm1000, %v981
  %1008 = vst.msk [vmem:[%s7 + $0x38] sm:$0xff] %vm1000, %v982
  %1009 = vst.msk [vmem:[%s7 + $0x40] sm:$0xff] %vm1000, %v983
  %1010 = vst.msk [vmem:[%s7 + $0x48] sm:$0xff] %vm1000, %v984
  %1011 = vst.msk [vmem:[%s7 + $0x50] sm:$0xff] %vm1000, %v985
  %1012 = vst.msk [vmem:[%s7 + $0x58] sm:$0xff] %vm1000, %v986
  %1013 = vst.msk [vmem:[%s7 + $0x60] sm:$0xff] %vm1000, %v987
  %1014 = vst.msk [vmem:[%s7 + $0x68] sm:$0xff] %vm1000, %v988
  %1015 = vst.msk [vmem:[%s7 + $0x70] sm:$0xff] %vm1000, %v989
  %1016 = vst.msk [vmem:[%s7 + $0x78] sm:$0xff] %vm1000, %v990
  %1017 = vst.msk [vmem:[%s7 + $0x80] sm:$0xff] %vm1000, %v991
  %1018 = vst.msk [vmem:[%s7 + $0x88] sm:$0xff] %vm1000, %v992
  %1019 = vst.msk [vmem:[%s7 + $0x90] sm:$0xff] %vm1000, %v993
  %1020 = vst.msk [vmem:[%s7 + $0x98] sm:$0xff] %vm1000, %v994
  %1021 = vst.msk [vmem:[%s7 + $0xa0] sm:$0xff] %vm1000, %v995
  %1022 = vst.msk [vmem:[%s7 + $0xa8] sm:$0xff] %vm1000, %v996
  %1023 = vst.msk [vmem:[%s7 + $0xb0] sm:$0xff] %vm1000, %v997
  %1024 = vst.msk [vmem:[%s7 + $0xb8] sm:$0xff] %vm1000, %v998
  %1025 = vst.msk [vmem:[%s7 + $0xc0] sm:$0xff] %vm1000, %v999
  // Predicated region
  $region30: #{tpu_custom_call.1} parent=0 // pred_check
    _
  $region31: #{tpu_custom_call.1} parent=0 // pred_check_branch
    %1027 = sbr.rel (0) target = $region33
  $region32: #{tpu_custom_call.1} parent=0 // pred_region
    _
  $region33: #{tpu_custom_call.1} parent=0 // pred_fallthru
    _
  // Predicated region
  $region34: #{tpu_custom_call.1} parent=0 // pred_check
    _
  $region35: #{tpu_custom_call.1} parent=0 // pred_check_branch
    %1029 = sbr.rel (0) target = $region37
  $region36: #{tpu_custom_call.1} parent=0 // pred_region
    _
  $region37: #{tpu_custom_call.1} parent=0 // pred_fallthru
    _

</llo_original>
